<compile_context>
chip_gen: v7x
topology: tpu7x:2x2x1
jax: 0.10.0
libtpu: 0.0.40
codegen_flags: <defaults>
</compile_context>

<pallas_src>
import functools

import jax
import jax.numpy as jnp
import numpy as np
from jax.experimental import pallas as pl
from jax.experimental.pallas import tpu as pltpu


def _adding_lstm_kernel(x_ref, wih_ref, whh_ref, b_ref, wout_ref, bout_ref,
                        out_ref, *, seq_len, batch, hidden_size):
    T, B, H = seq_len, batch, hidden_size

    # ---- hoisted input projection (off the serial chain) -------------------
    # input_size == 2, so the projection is two VPU broadcast-FMAs rather than
    # a K=2 lane-sparse f32 MXU pass.  forget_bias and the x2 g-gate scaling
    # are already folded into wih/b by the wrapper.
    x = x_ref[...]                                   # (T*B, 2)  f32
    wih = wih_ref[...]                               # (2, 4H)   f32
    xg = (x[:, 0:1] * wih[0:1, :]
          + x[:, 1:2] * wih[1:2, :]
          + b_ref[...])                              # (T*B, 4H) f32

    w_hh = whh_ref[...]                              # (H, 4H) bf16, g-cols x2

    def apply_gates(gates, c_prev):
        # ONE full-width EUP pass (sigmoid) over the (B, 4H) = (8, 128) tile.
        # Gate order i, f, g, o (PyTorch nn.LSTM).  The g pre-activation was
        # scaled by 2 host-side, so tanh(z) = 2*sigmoid(2z) - 1 is one FMA.
        sig = jax.nn.sigmoid(gates)
        i_g = sig[:, 0 * H:1 * H]
        f_g = sig[:, 1 * H:2 * H]
        g_g = 2.0 * sig[:, 2 * H:3 * H] - 1.0
        o_g = sig[:, 3 * H:4 * H]
        c = f_g * c_prev + i_g * g_g
        h = o_g * jnp.tanh(c)                        # small (B, H) EUP pass
        return h, c

    # t = 0: h0 = c0 = 0, so the recurrent matmul contributes nothing -> skip.
    h, c = apply_gates(xg[0:B, :], jnp.zeros((B, H), jnp.float32))

    # Remaining timesteps: fully unrolled static loop; h/c stay in vregs.
    # Recurrent dot is a single-pass bf16 MXU matmul with f32 accumulation.
    for t in range(1, T):
        gates = xg[t * B:(t + 1) * B, :] + jnp.dot(
            h.astype(jnp.bfloat16), w_hh, preferred_element_type=jnp.float32)
        h, c = apply_gates(gates, c)

    # Final Linear(H, 1) on the last hidden state: broadcast-multiply (VPU)
    # + cross-lane reduction (XLU) + scalar bias from SMEM.
    out_ref[...] = (jnp.sum(h * wout_ref[...], axis=-1, keepdims=True)
                    + bout_ref[0, 0])


@functools.partial(jax.jit, static_argnames=("forget_bias",))
def adding_model_forward(x, w_ih_t, w_hh_t, b, w_out_t, b_out, *, forget_bias):
    """x: [T, B, I] f32 (time-major, torch.nn.LSTM default layout).

    Returns [B, 1] f32 = Linear(LSTM(x)[-1]).
    """
    T, B, I = x.shape
    H = w_hh_t.shape[0]
    assert w_ih_t.shape == (I, 4 * H)
    assert w_hh_t.shape == (H, 4 * H)
    assert w_out_t.shape == (H, 1)

    # Host-side prep (fused by XLA, off the kernel critical path):
    #  * fold forget_bias into the f-gate bias columns,
    #  * scale the g-gate columns of W_ih, W_hh, b by 2 (tanh via sigmoid),
    #  * cast W_hh to bf16 so the recurrent dot is a single MXU pass,
    #  * flatten x to (T*B, I); W_out as a lane row; b_out as (1,1) for SMEM.
    b2 = b.reshape(1, 4 * H)
    b2 = b2.at[:, H:2 * H].add(forget_bias)
    b2 = b2.at[:, 2 * H:3 * H].multiply(2.0)
    wih2 = w_ih_t.at[:, 2 * H:3 * H].multiply(2.0)
    whh2 = w_hh_t.at[:, 2 * H:3 * H].multiply(2.0).astype(jnp.bfloat16)
    x2d = x.reshape(T * B, I)            # row t*B + n  ==  x[t, n, :]
    w_out_row = w_out_t.reshape(1, H)
    b_out_s = b_out.reshape(1, 1)

    kernel = functools.partial(_adding_lstm_kernel,
                               seq_len=T, batch=B, hidden_size=H)

    return pl.pallas_call(
        kernel,
        out_shape=jax.ShapeDtypeStruct((B, 1), jnp.float32),
        in_specs=[
            pl.BlockSpec(memory_space=pltpu.MemorySpace.VMEM),   # x (T*B, I)
            pl.BlockSpec(memory_space=pltpu.MemorySpace.VMEM),   # W_ih^T (x2 g)
            pl.BlockSpec(memory_space=pltpu.MemorySpace.VMEM),   # W_hh^T bf16
            pl.BlockSpec(memory_space=pltpu.MemorySpace.VMEM),   # bias (+fb,x2 g)
            pl.BlockSpec(memory_space=pltpu.MemorySpace.VMEM),   # W_out row
            pl.BlockSpec(memory_space=pltpu.MemorySpace.SMEM),   # b_out scalar
        ],
        out_specs=pl.BlockSpec(memory_space=pltpu.MemorySpace.VMEM),
    )(x2d, wih2, whh2, b2, w_out_row, b_out_s)


def _reference_forward(x, w_ih_t, w_hh_t, b, w_out_t, b_out, forget_bias):
    """Pure f32 JAX reference matching PyTorch LSTM-with-forget-bias."""
    T, B, I = x.shape
    H = w_hh_t.shape[0]
    h = jnp.zeros((B, H), jnp.float32)
    c = jnp.zeros((B, H), jnp.float32)
    for t in range(T):
        gates = x[t] @ w_ih_t + h @ w_hh_t + b
        i = jax.nn.sigmoid(gates[:, 0:H])
        f = jax.nn.sigmoid(gates[:, H:2 * H] + forget_bias)
        g = jnp.tanh(gates[:, 2 * H:3 * H])
        o = jax.nn.sigmoid(gates[:, 3 * H:4 * H])
        c = f * c + i * g
        h = o * jnp.tanh(c)
    return h @ w_out_t + b_out


if __name__ == "__main__":
    # Shapes implied by the module: input_size=2 (adding problem),
    # hidden_size=32, seq=8, batch=8.
    T, B, I, H = 8, 8, 2, 32
    forget_bias = 1.0

    key = jax.random.PRNGKey(0)
    kx, k1, k2, k3, k4, k5, k6 = jax.random.split(key, 7)

    x = jax.random.normal(kx, (T, B, I), dtype=jnp.float32)

    # Deterministic synthetic parameters (gate order i, f, g, o).
    scale = 1.0 / np.sqrt(H)
    w_ih_t = jax.random.uniform(k1, (I, 4 * H), jnp.float32, -scale, scale)
    w_hh_t = jax.random.uniform(k2, (H, 4 * H), jnp.float32, -scale, scale)
    b_ih = jax.random.uniform(k3, (1, 4 * H), jnp.float32, -scale, scale)
    b_hh = jax.random.uniform(k4, (1, 4 * H), jnp.float32, -scale, scale)
    b = b_ih + b_hh
    w_out_t = jax.random.uniform(k5, (H, 1), jnp.float32, -scale, scale)
    b_out = jax.random.uniform(k6, (1, 1), jnp.float32, -scale, scale)

    # TODO(synk): `create_lstm_variant(model_type, ...)` supports multiple LSTM
    # variants; only the standard LSTM-with-forget-bias variant is implemented.

    out = adding_model_forward(x, w_ih_t, w_hh_t, b, w_out_t, b_out,
                               forget_bias=forget_bias)
    out = jax.block_until_ready(out)

    ref = _reference_forward(x, w_ih_t, w_hh_t, b, w_out_t, b_out, forget_bias)
    # Tolerance relaxed from 1e-5 -> 2e-2: the recurrent dot runs as a
    # single-pass bf16 MXU matmul (f32 accumulation) per the perf review.
    np.testing.assert_allclose(np.asarray(out), np.asarray(ref),
                               rtol=2e-2, atol=2e-2)
    print("KERNEL_OK")
</pallas_src>

<mosaic_0001>
module attributes {stable_mosaic.version = 11 : i64} {
  func.func @_adding_lstm_kernel(%arg0: memref<64x2xf32, #tpu.memory_space<vmem>>, %arg1: memref<2x128xf32, #tpu.memory_space<vmem>>, %arg2: memref<32x128xbf16, #tpu.memory_space<vmem>>, %arg3: memref<1x128xf32, #tpu.memory_space<vmem>>, %arg4: memref<1x32xf32, #tpu.memory_space<vmem>>, %arg5: memref<1x1xf32, #tpu.memory_space<smem>>, %arg6: memref<8x1xf32, #tpu.memory_space<vmem>>) attributes {dimension_semantics = [], scalar_prefetch = 0 : i64, scratch_operands = 0 : i64, tpu.core_type = #tpu.core_type<tc>} {
    %c0 = arith.constant 0 : index
    %c0_0 = arith.constant 0 : index
    %0 = vector.load %arg0[%c0, %c0_0] : memref<64x2xf32, #tpu.memory_space<vmem>>, vector<64x2xf32>
    %c0_1 = arith.constant 0 : index
    %c0_2 = arith.constant 0 : index
    %1 = vector.load %arg1[%c0_1, %c0_2] : memref<2x128xf32, #tpu.memory_space<vmem>>, vector<2x128xf32>
    %2 = vector.extract_strided_slice %0 {offsets = [0, 0], sizes = [64, 1], strides = [1, 1]} : vector<64x2xf32> to vector<64x1xf32>
    %3 = vector.extract_strided_slice %1 {offsets = [0, 0], sizes = [1, 128], strides = [1, 1]} : vector<2x128xf32> to vector<1x128xf32>
    %4 = vector.broadcast %2 : vector<64x1xf32> to vector<64x128xf32>
    %5 = vector.broadcast %3 : vector<1x128xf32> to vector<64x128xf32>
    %6 = arith.mulf %4, %5 : vector<64x128xf32>
    %7 = vector.extract_strided_slice %0 {offsets = [0, 1], sizes = [64, 1], strides = [1, 1]} : vector<64x2xf32> to vector<64x1xf32>
    %8 = vector.extract_strided_slice %1 {offsets = [1, 0], sizes = [1, 128], strides = [1, 1]} : vector<2x128xf32> to vector<1x128xf32>
    %9 = vector.broadcast %7 : vector<64x1xf32> to vector<64x128xf32>
    %10 = vector.broadcast %8 : vector<1x128xf32> to vector<64x128xf32>
    %11 = arith.mulf %9, %10 : vector<64x128xf32>
    %12 = arith.addf %6, %11 : vector<64x128xf32>
    %c0_3 = arith.constant 0 : index
    %c0_4 = arith.constant 0 : index
    %13 = vector.load %arg3[%c0_3, %c0_4] : memref<1x128xf32, #tpu.memory_space<vmem>>, vector<1x128xf32>
    %14 = vector.broadcast %13 : vector<1x128xf32> to vector<64x128xf32>
    %15 = arith.addf %12, %14 : vector<64x128xf32>
    %c0_5 = arith.constant 0 : index
    %c0_6 = arith.constant 0 : index
    %16 = vector.load %arg2[%c0_5, %c0_6] : memref<32x128xbf16, #tpu.memory_space<vmem>>, vector<32x128xbf16>
    %17 = vector.extract_strided_slice %15 {offsets = [0, 0], sizes = [8, 128], strides = [1, 1]} : vector<64x128xf32> to vector<8x128xf32>
    %cst = arith.constant 0.000000e+00 : f32
    %18 = vector.broadcast %cst : f32 to vector<8x32xf32>
    %19 = arith.negf %17 : vector<8x128xf32>
    %20 = math.exp %19 : vector<8x128xf32>
    %cst_7 = arith.constant 1.000000e+00 : f32
    %21 = vector.broadcast %cst_7 : f32 to vector<8x128xf32>
    %22 = arith.addf %21, %20 : vector<8x128xf32>
    %23 = arith.divf %21, %22 : vector<8x128xf32>
    %24 = vector.extract_strided_slice %23 {offsets = [0, 0], sizes = [8, 32], strides = [1, 1]} : vector<8x128xf32> to vector<8x32xf32>
    %25 = vector.extract_strided_slice %23 {offsets = [0, 32], sizes = [8, 32], strides = [1, 1]} : vector<8x128xf32> to vector<8x32xf32>
    %26 = vector.extract_strided_slice %23 {offsets = [0, 64], sizes = [8, 32], strides = [1, 1]} : vector<8x128xf32> to vector<8x32xf32>
    %cst_8 = arith.constant 2.000000e+00 : f32
    %27 = vector.broadcast %cst_8 : f32 to vector<8x32xf32>
    %28 = arith.mulf %27, %26 : vector<8x32xf32>
    %cst_9 = arith.constant 1.000000e+00 : f32
    %29 = vector.broadcast %cst_9 : f32 to vector<8x32xf32>
    %30 = arith.subf %28, %29 : vector<8x32xf32>
    %31 = vector.extract_strided_slice %23 {offsets = [0, 96], sizes = [8, 32], strides = [1, 1]} : vector<8x128xf32> to vector<8x32xf32>
    %32 = arith.mulf %25, %18 : vector<8x32xf32>
    %33 = arith.mulf %24, %30 : vector<8x32xf32>
    %34 = arith.addf %32, %33 : vector<8x32xf32>
    %35 = math.tanh %34 : vector<8x32xf32>
    %36 = arith.mulf %31, %35 : vector<8x32xf32>
    %37 = vector.extract_strided_slice %15 {offsets = [8, 0], sizes = [8, 128], strides = [1, 1]} : vector<64x128xf32> to vector<8x128xf32>
    %38 = arith.truncf %36 : vector<8x32xf32> to vector<8x32xbf16>
    %cst_10 = arith.constant dense<0.000000e+00> : vector<8x128xf32>
    %39 = tpu.matmul %38, %16, %cst_10 {dimension_numbers = #tpu.dot_dimension_numbers<[1], [0], [0], [1], [0, 0, 1, 1], [], []>} : vector<8x32xbf16>, vector<32x128xbf16>, vector<8x128xf32> -> vector<8x128xf32>
    %40 = arith.addf %37, %39 : vector<8x128xf32>
    %41 = arith.negf %40 : vector<8x128xf32>
    %42 = math.exp %41 : vector<8x128xf32>
    %cst_11 = arith.constant 1.000000e+00 : f32
    %43 = vector.broadcast %cst_11 : f32 to vector<8x128xf32>
    %44 = arith.addf %43, %42 : vector<8x128xf32>
    %45 = arith.divf %43, %44 : vector<8x128xf32>
    %46 = vector.extract_strided_slice %45 {offsets = [0, 0], sizes = [8, 32], strides = [1, 1]} : vector<8x128xf32> to vector<8x32xf32>
    %47 = vector.extract_strided_slice %45 {offsets = [0, 32], sizes = [8, 32], strides = [1, 1]} : vector<8x128xf32> to vector<8x32xf32>
    %48 = vector.extract_strided_slice %45 {offsets = [0, 64], sizes = [8, 32], strides = [1, 1]} : vector<8x128xf32> to vector<8x32xf32>
    %cst_12 = arith.constant 2.000000e+00 : f32
    %49 = vector.broadcast %cst_12 : f32 to vector<8x32xf32>
    %50 = arith.mulf %49, %48 : vector<8x32xf32>
    %cst_13 = arith.constant 1.000000e+00 : f32
    %51 = vector.broadcast %cst_13 : f32 to vector<8x32xf32>
    %52 = arith.subf %50, %51 : vector<8x32xf32>
    %53 = vector.extract_strided_slice %45 {offsets = [0, 96], sizes = [8, 32], strides = [1, 1]} : vector<8x128xf32> to vector<8x32xf32>
    %54 = arith.mulf %47, %34 : vector<8x32xf32>
    %55 = arith.mulf %46, %52 : vector<8x32xf32>
    %56 = arith.addf %54, %55 : vector<8x32xf32>
    %57 = math.tanh %56 : vector<8x32xf32>
    %58 = arith.mulf %53, %57 : vector<8x32xf32>
    %59 = vector.extract_strided_slice %15 {offsets = [16, 0], sizes = [8, 128], strides = [1, 1]} : vector<64x128xf32> to vector<8x128xf32>
    %60 = arith.truncf %58 : vector<8x32xf32> to vector<8x32xbf16>
    %cst_14 = arith.constant dense<0.000000e+00> : vector<8x128xf32>
    %61 = tpu.matmul %60, %16, %cst_14 {dimension_numbers = #tpu.dot_dimension_numbers<[1], [0], [0], [1], [0, 0, 1, 1], [], []>} : vector<8x32xbf16>, vector<32x128xbf16>, vector<8x128xf32> -> vector<8x128xf32>
    %62 = arith.addf %59, %61 : vector<8x128xf32>
    %63 = arith.negf %62 : vector<8x128xf32>
    %64 = math.exp %63 : vector<8x128xf32>
    %cst_15 = arith.constant 1.000000e+00 : f32
    %65 = vector.broadcast %cst_15 : f32 to vector<8x128xf32>
    %66 = arith.addf %65, %64 : vector<8x128xf32>
    %67 = arith.divf %65, %66 : vector<8x128xf32>
    %68 = vector.extract_strided_slice %67 {offsets = [0, 0], sizes = [8, 32], strides = [1, 1]} : vector<8x128xf32> to vector<8x32xf32>
    %69 = vector.extract_strided_slice %67 {offsets = [0, 32], sizes = [8, 32], strides = [1, 1]} : vector<8x128xf32> to vector<8x32xf32>
    %70 = vector.extract_strided_slice %67 {offsets = [0, 64], sizes = [8, 32], strides = [1, 1]} : vector<8x128xf32> to vector<8x32xf32>
    %cst_16 = arith.constant 2.000000e+00 : f32
    %71 = vector.broadcast %cst_16 : f32 to vector<8x32xf32>
    %72 = arith.mulf %71, %70 : vector<8x32xf32>
    %cst_17 = arith.constant 1.000000e+00 : f32
    %73 = vector.broadcast %cst_17 : f32 to vector<8x32xf32>
    %74 = arith.subf %72, %73 : vector<8x32xf32>
    %75 = vector.extract_strided_slice %67 {offsets = [0, 96], sizes = [8, 32], strides = [1, 1]} : vector<8x128xf32> to vector<8x32xf32>
    %76 = arith.mulf %69, %56 : vector<8x32xf32>
    %77 = arith.mulf %68, %74 : vector<8x32xf32>
    %78 = arith.addf %76, %77 : vector<8x32xf32>
    %79 = math.tanh %78 : vector<8x32xf32>
    %80 = arith.mulf %75, %79 : vector<8x32xf32>
    %81 = vector.extract_strided_slice %15 {offsets = [24, 0], sizes = [8, 128], strides = [1, 1]} : vector<64x128xf32> to vector<8x128xf32>
    %82 = arith.truncf %80 : vector<8x32xf32> to vector<8x32xbf16>
    %cst_18 = arith.constant dense<0.000000e+00> : vector<8x128xf32>
    %83 = tpu.matmul %82, %16, %cst_18 {dimension_numbers = #tpu.dot_dimension_numbers<[1], [0], [0], [1], [0, 0, 1, 1], [], []>} : vector<8x32xbf16>, vector<32x128xbf16>, vector<8x128xf32> -> vector<8x128xf32>
    %84 = arith.addf %81, %83 : vector<8x128xf32>
    %85 = arith.negf %84 : vector<8x128xf32>
    %86 = math.exp %85 : vector<8x128xf32>
    %cst_19 = arith.constant 1.000000e+00 : f32
    %87 = vector.broadcast %cst_19 : f32 to vector<8x128xf32>
    %88 = arith.addf %87, %86 : vector<8x128xf32>
    %89 = arith.divf %87, %88 : vector<8x128xf32>
    %90 = vector.extract_strided_slice %89 {offsets = [0, 0], sizes = [8, 32], strides = [1, 1]} : vector<8x128xf32> to vector<8x32xf32>
    %91 = vector.extract_strided_slice %89 {offsets = [0, 32], sizes = [8, 32], strides = [1, 1]} : vector<8x128xf32> to vector<8x32xf32>
    %92 = vector.extract_strided_slice %89 {offsets = [0, 64], sizes = [8, 32], strides = [1, 1]} : vector<8x128xf32> to vector<8x32xf32>
    %cst_20 = arith.constant 2.000000e+00 : f32
    %93 = vector.broadcast %cst_20 : f32 to vector<8x32xf32>
    %94 = arith.mulf %93, %92 : vector<8x32xf32>
    %cst_21 = arith.constant 1.000000e+00 : f32
    %95 = vector.broadcast %cst_21 : f32 to vector<8x32xf32>
    %96 = arith.subf %94, %95 : vector<8x32xf32>
    %97 = vector.extract_strided_slice %89 {offsets = [0, 96], sizes = [8, 32], strides = [1, 1]} : vector<8x128xf32> to vector<8x32xf32>
    %98 = arith.mulf %91, %78 : vector<8x32xf32>
    %99 = arith.mulf %90, %96 : vector<8x32xf32>
    %100 = arith.addf %98, %99 : vector<8x32xf32>
    %101 = math.tanh %100 : vector<8x32xf32>
    %102 = arith.mulf %97, %101 : vector<8x32xf32>
    %103 = vector.extract_strided_slice %15 {offsets = [32, 0], sizes = [8, 128], strides = [1, 1]} : vector<64x128xf32> to vector<8x128xf32>
    %104 = arith.truncf %102 : vector<8x32xf32> to vector<8x32xbf16>
    %cst_22 = arith.constant dense<0.000000e+00> : vector<8x128xf32>
    %105 = tpu.matmul %104, %16, %cst_22 {dimension_numbers = #tpu.dot_dimension_numbers<[1], [0], [0], [1], [0, 0, 1, 1], [], []>} : vector<8x32xbf16>, vector<32x128xbf16>, vector<8x128xf32> -> vector<8x128xf32>
    %106 = arith.addf %103, %105 : vector<8x128xf32>
    %107 = arith.negf %106 : vector<8x128xf32>
    %108 = math.exp %107 : vector<8x128xf32>
    %cst_23 = arith.constant 1.000000e+00 : f32
    %109 = vector.broadcast %cst_23 : f32 to vector<8x128xf32>
    %110 = arith.addf %109, %108 : vector<8x128xf32>
    %111 = arith.divf %109, %110 : vector<8x128xf32>
    %112 = vector.extract_strided_slice %111 {offsets = [0, 0], sizes = [8, 32], strides = [1, 1]} : vector<8x128xf32> to vector<8x32xf32>
    %113 = vector.extract_strided_slice %111 {offsets = [0, 32], sizes = [8, 32], strides = [1, 1]} : vector<8x128xf32> to vector<8x32xf32>
    %114 = vector.extract_strided_slice %111 {offsets = [0, 64], sizes = [8, 32], strides = [1, 1]} : vector<8x128xf32> to vector<8x32xf32>
    %cst_24 = arith.constant 2.000000e+00 : f32
    %115 = vector.broadcast %cst_24 : f32 to vector<8x32xf32>
    %116 = arith.mulf %115, %114 : vector<8x32xf32>
    %cst_25 = arith.constant 1.000000e+00 : f32
    %117 = vector.broadcast %cst_25 : f32 to vector<8x32xf32>
    %118 = arith.subf %116, %117 : vector<8x32xf32>
    %119 = vector.extract_strided_slice %111 {offsets = [0, 96], sizes = [8, 32], strides = [1, 1]} : vector<8x128xf32> to vector<8x32xf32>
    %120 = arith.mulf %113, %100 : vector<8x32xf32>
    %121 = arith.mulf %112, %118 : vector<8x32xf32>
    %122 = arith.addf %120, %121 : vector<8x32xf32>
    %123 = math.tanh %122 : vector<8x32xf32>
    %124 = arith.mulf %119, %123 : vector<8x32xf32>
    %125 = vector.extract_strided_slice %15 {offsets = [40, 0], sizes = [8, 128], strides = [1, 1]} : vector<64x128xf32> to vector<8x128xf32>
    %126 = arith.truncf %124 : vector<8x32xf32> to vector<8x32xbf16>
    %cst_26 = arith.constant dense<0.000000e+00> : vector<8x128xf32>
    %127 = tpu.matmul %126, %16, %cst_26 {dimension_numbers = #tpu.dot_dimension_numbers<[1], [0], [0], [1], [0, 0, 1, 1], [], []>} : vector<8x32xbf16>, vector<32x128xbf16>, vector<8x128xf32> -> vector<8x128xf32>
    %128 = arith.addf %125, %127 : vector<8x128xf32>
    %129 = arith.negf %128 : vector<8x128xf32>
    %130 = math.exp %129 : vector<8x128xf32>
    %cst_27 = arith.constant 1.000000e+00 : f32
    %131 = vector.broadcast %cst_27 : f32 to vector<8x128xf32>
    %132 = arith.addf %131, %130 : vector<8x128xf32>
    %133 = arith.divf %131, %132 : vector<8x128xf32>
    %134 = vector.extract_strided_slice %133 {offsets = [0, 0], sizes = [8, 32], strides = [1, 1]} : vector<8x128xf32> to vector<8x32xf32>
    %135 = vector.extract_strided_slice %133 {offsets = [0, 32], sizes = [8, 32], strides = [1, 1]} : vector<8x128xf32> to vector<8x32xf32>
    %136 = vector.extract_strided_slice %133 {offsets = [0, 64], sizes = [8, 32], strides = [1, 1]} : vector<8x128xf32> to vector<8x32xf32>
    %cst_28 = arith.constant 2.000000e+00 : f32
    %137 = vector.broadcast %cst_28 : f32 to vector<8x32xf32>
    %138 = arith.mulf %137, %136 : vector<8x32xf32>
    %cst_29 = arith.constant 1.000000e+00 : f32
    %139 = vector.broadcast %cst_29 : f32 to vector<8x32xf32>
    %140 = arith.subf %138, %139 : vector<8x32xf32>
    %141 = vector.extract_strided_slice %133 {offsets = [0, 96], sizes = [8, 32], strides = [1, 1]} : vector<8x128xf32> to vector<8x32xf32>
    %142 = arith.mulf %135, %122 : vector<8x32xf32>
    %143 = arith.mulf %134, %140 : vector<8x32xf32>
    %144 = arith.addf %142, %143 : vector<8x32xf32>
    %145 = math.tanh %144 : vector<8x32xf32>
    %146 = arith.mulf %141, %145 : vector<8x32xf32>
    %147 = vector.extract_strided_slice %15 {offsets = [48, 0], sizes = [8, 128], strides = [1, 1]} : vector<64x128xf32> to vector<8x128xf32>
    %148 = arith.truncf %146 : vector<8x32xf32> to vector<8x32xbf16>
    %cst_30 = arith.constant dense<0.000000e+00> : vector<8x128xf32>
    %149 = tpu.matmul %148, %16, %cst_30 {dimension_numbers = #tpu.dot_dimension_numbers<[1], [0], [0], [1], [0, 0, 1, 1], [], []>} : vector<8x32xbf16>, vector<32x128xbf16>, vector<8x128xf32> -> vector<8x128xf32>
    %150 = arith.addf %147, %149 : vector<8x128xf32>
    %151 = arith.negf %150 : vector<8x128xf32>
    %152 = math.exp %151 : vector<8x128xf32>
    %cst_31 = arith.constant 1.000000e+00 : f32
    %153 = vector.broadcast %cst_31 : f32 to vector<8x128xf32>
    %154 = arith.addf %153, %152 : vector<8x128xf32>
    %155 = arith.divf %153, %154 : vector<8x128xf32>
    %156 = vector.extract_strided_slice %155 {offsets = [0, 0], sizes = [8, 32], strides = [1, 1]} : vector<8x128xf32> to vector<8x32xf32>
    %157 = vector.extract_strided_slice %155 {offsets = [0, 32], sizes = [8, 32], strides = [1, 1]} : vector<8x128xf32> to vector<8x32xf32>
    %158 = vector.extract_strided_slice %155 {offsets = [0, 64], sizes = [8, 32], strides = [1, 1]} : vector<8x128xf32> to vector<8x32xf32>
    %cst_32 = arith.constant 2.000000e+00 : f32
    %159 = vector.broadcast %cst_32 : f32 to vector<8x32xf32>
    %160 = arith.mulf %159, %158 : vector<8x32xf32>
    %cst_33 = arith.constant 1.000000e+00 : f32
    %161 = vector.broadcast %cst_33 : f32 to vector<8x32xf32>
    %162 = arith.subf %160, %161 : vector<8x32xf32>
    %163 = vector.extract_strided_slice %155 {offsets = [0, 96], sizes = [8, 32], strides = [1, 1]} : vector<8x128xf32> to vector<8x32xf32>
    %164 = arith.mulf %157, %144 : vector<8x32xf32>
    %165 = arith.mulf %156, %162 : vector<8x32xf32>
    %166 = arith.addf %164, %165 : vector<8x32xf32>
    %167 = math.tanh %166 : vector<8x32xf32>
    %168 = arith.mulf %163, %167 : vector<8x32xf32>
    %169 = vector.extract_strided_slice %15 {offsets = [56, 0], sizes = [8, 128], strides = [1, 1]} : vector<64x128xf32> to vector<8x128xf32>
    %170 = arith.truncf %168 : vector<8x32xf32> to vector<8x32xbf16>
    %cst_34 = arith.constant dense<0.000000e+00> : vector<8x128xf32>
    %171 = tpu.matmul %170, %16, %cst_34 {dimension_numbers = #tpu.dot_dimension_numbers<[1], [0], [0], [1], [0, 0, 1, 1], [], []>} : vector<8x32xbf16>, vector<32x128xbf16>, vector<8x128xf32> -> vector<8x128xf32>
    %172 = arith.addf %169, %171 : vector<8x128xf32>
    %173 = arith.negf %172 : vector<8x128xf32>
    %174 = math.exp %173 : vector<8x128xf32>
    %cst_35 = arith.constant 1.000000e+00 : f32
    %175 = vector.broadcast %cst_35 : f32 to vector<8x128xf32>
    %176 = arith.addf %175, %174 : vector<8x128xf32>
    %177 = arith.divf %175, %176 : vector<8x128xf32>
    %178 = vector.extract_strided_slice %177 {offsets = [0, 0], sizes = [8, 32], strides = [1, 1]} : vector<8x128xf32> to vector<8x32xf32>
    %179 = vector.extract_strided_slice %177 {offsets = [0, 32], sizes = [8, 32], strides = [1, 1]} : vector<8x128xf32> to vector<8x32xf32>
    %180 = vector.extract_strided_slice %177 {offsets = [0, 64], sizes = [8, 32], strides = [1, 1]} : vector<8x128xf32> to vector<8x32xf32>
    %cst_36 = arith.constant 2.000000e+00 : f32
    %181 = vector.broadcast %cst_36 : f32 to vector<8x32xf32>
    %182 = arith.mulf %181, %180 : vector<8x32xf32>
    %cst_37 = arith.constant 1.000000e+00 : f32
    %183 = vector.broadcast %cst_37 : f32 to vector<8x32xf32>
    %184 = arith.subf %182, %183 : vector<8x32xf32>
    %185 = vector.extract_strided_slice %177 {offsets = [0, 96], sizes = [8, 32], strides = [1, 1]} : vector<8x128xf32> to vector<8x32xf32>
    %186 = arith.mulf %179, %166 : vector<8x32xf32>
    %187 = arith.mulf %178, %184 : vector<8x32xf32>
    %188 = arith.addf %186, %187 : vector<8x32xf32>
    %189 = math.tanh %188 : vector<8x32xf32>
    %190 = arith.mulf %185, %189 : vector<8x32xf32>
    %c0_38 = arith.constant 0 : index
    %c0_39 = arith.constant 0 : index
    %191 = vector.load %arg4[%c0_38, %c0_39] : memref<1x32xf32, #tpu.memory_space<vmem>>, vector<1x32xf32>
    %192 = vector.broadcast %191 : vector<1x32xf32> to vector<8x32xf32>
    %193 = arith.mulf %190, %192 : vector<8x32xf32>
    %cst_40 = arith.constant dense<0.000000e+00> : vector<8xf32>
    %194 = vector.multi_reduction <add>, %193, %cst_40 [1] : vector<8x32xf32> to vector<8xf32>
    %195 = vector.shape_cast %194 : vector<8xf32> to vector<8x1xf32>
    %c0_41 = arith.constant 0 : index
    %c0_42 = arith.constant 0 : index
    %196 = memref.load %arg5[%c0_41, %c0_42] : memref<1x1xf32, #tpu.memory_space<smem>>
    %197 = vector.broadcast %196 : f32 to vector<8x1xf32>
    %198 = arith.addf %195, %197 : vector<8x1xf32>
    %c0_43 = arith.constant 0 : index
    %c0_44 = arith.constant 0 : index
    %199 = vector.load %arg6[%c0_43, %c0_44] : memref<8x1xf32, #tpu.memory_space<vmem>>, vector<8x1xf32>
    tpu.vector_store %arg6[%c0_43, %c0_44], %198 {strides = array<i32>} : memref<8x1xf32, #tpu.memory_space<vmem>>, vector<8x1xf32>,
    return
  }
}

</mosaic_0001>

<llo_original>
// kernel: adding_model_forward.1
$region0: #{adding_model_forward.1}
  #allocation0 [shape = 'u32[]', space=smem, size = 0x4, offset = 0x4, fixed_abs, tag = 'smem constant byte address 0x4 - core index']
  #allocation1 [shape = 'u32[144,128]{1,0:T(1,128)}', space=vmem, size = 0x12000, scoped, tag = 'internal scratch']
  #allocation2 [shape = 'f32[1,1]{1,0:T(1,128)S(6)}', space=smem, size = 0x200, scoped, tag = 'scoped memory for adding_model_forward.1']
  %s0 = inlined_call_operand.vmem [shape: f32[64,2], index: 0, kind: input, shape index: {}]
  %s1 = inlined_call_operand.vmem [shape: f32[2,128], index: 1, kind: input, shape index: {}]
  %s2 = inlined_call_operand.vmem [shape: bf16[32,128], index: 2, kind: input, shape index: {}]
  %s3 = inlined_call_operand.vmem [shape: f32[1,128], index: 3, kind: input, shape index: {}]
  %s4 = inlined_call_operand.vmem [shape: f32[1,32], index: 4, kind: input, shape index: {}]
  %s5 = inlined_call_operand.<no memory space> [shape: f32[1,1], index: 5, kind: input, shape index: {}]
  %s6 = inlined_call_operand.vmem [shape: f32[8,1], index: 6, kind: output, shape index: {}]
  %s7 = sld [smem:[#allocation0]]
  $region34: #{adding_model_forward.1} parent=0
    _
  %s9 = ssub.s32 1, %s7
  %s10 = scalar_select 0, %s9, %s7
  %11 = sst [smem:[#allocation2]] %s5
  // Predicated region
  $region2: #{adding_model_forward.1} parent=0 // pred_check
    _
  $region3: #{adding_model_forward.1} parent=0 // pred_check_branch
    %13 = sbr.rel (0) target = $region5
  $region4: #{adding_model_forward.1} parent=0 // pred_region
    _
  $region5: #{adding_model_forward.1} parent=0 // pred_fallthru
    _
  // Predicated region
  $region6: #{adding_model_forward.1} parent=0 // pred_check
    _
  $region7: #{adding_model_forward.1} parent=0 // pred_check_branch
    %15 = sbr.rel (0) target = $region9
  $region8: #{adding_model_forward.1} parent=0 // pred_region
    _
  $region9: #{adding_model_forward.1} parent=0 // pred_fallthru
    _
  // Predicated region
  $region10: #{adding_model_forward.1} parent=0 // pred_check
    _
  $region11: #{adding_model_forward.1} parent=0 // pred_check_branch
    %17 = sbr.rel (0) target = $region13
  $region12: #{adding_model_forward.1} parent=0 // pred_region
    _
  $region13: #{adding_model_forward.1} parent=0 // pred_fallthru
    _
  // Predicated region
  $region14: #{adding_model_forward.1} parent=0 // pred_check
    _
  $region15: #{adding_model_forward.1} parent=0 // pred_check_branch
    %19 = sbr.rel (0) target = $region17
  $region16: #{adding_model_forward.1} parent=0 // pred_region
    _
  $region17: #{adding_model_forward.1} parent=0 // pred_fallthru
    _
  // Predicated region
  $region18: #{adding_model_forward.1} parent=0 // pred_check
    _
  $region19: #{adding_model_forward.1} parent=0 // pred_check_branch
    %21 = sbr.rel (0) target = $region21
  $region20: #{adding_model_forward.1} parent=0 // pred_region
    _
  $region21: #{adding_model_forward.1} parent=0 // pred_fallthru
    _
  // Predicated region
  $region22: #{adding_model_forward.1} parent=0 // pred_check
    _
  $region23: #{adding_model_forward.1} parent=0 // pred_check_branch
    %23 = sbr.rel (0) target = $region25
  $region24: #{adding_model_forward.1} parent=0 // pred_region
    _
  $region25: #{adding_model_forward.1} parent=0 // pred_fallthru
    _
  %v25 = vld [vmem:[%s0] sm:$0xff]
  %v26 = vld [vmem:[%s0 + $0x8] sm:$0xff]
  %v27 = vld [vmem:[%s0 + $0x10] sm:$0xff]
  %v28 = vld [vmem:[%s0 + $0x18] sm:$0xff]
  %v29 = vld [vmem:[%s0 + $0x20] sm:$0xff]
  %v30 = vld [vmem:[%s0 + $0x28] sm:$0xff]
  %v31 = vld [vmem:[%s0 + $0x30] sm:$0xff]
  %v32 = vld [vmem:[%s0 + $0x38] sm:$0xff]
  %v33 = vld [vmem:[%s1] sm:$0x3]
  %35 = vset.pattern.permute.xlu0 0
  %36 = vperm.xlu0 %35, %v25
  %v37 = vpop.permute.xlu0 %36
  %40 = vset.pattern.permute.xlu0 0
  %41 = vperm.xlu0 %40, %v26
  %v42 = vpop.permute.xlu0 %41
  %45 = vset.pattern.permute.xlu0 0
  %46 = vperm.xlu0 %45, %v27
  %v47 = vpop.permute.xlu0 %46
  %50 = vset.pattern.permute.xlu0 0
  %51 = vperm.xlu0 %50, %v28
  %v52 = vpop.permute.xlu0 %51
  %55 = vset.pattern.permute.xlu0 0
  %56 = vperm.xlu0 %55, %v29
  %v57 = vpop.permute.xlu0 %56
  %60 = vset.pattern.permute.xlu0 0
  %61 = vperm.xlu0 %60, %v30
  %v62 = vpop.permute.xlu0 %61
  %65 = vset.pattern.permute.xlu0 0
  %66 = vperm.xlu0 %65, %v31
  %v67 = vpop.permute.xlu0 %66
  %70 = vset.pattern.permute.xlu0 0
  %71 = vperm.xlu0 %70, %v32
  %v72 = vpop.permute.xlu0 %71
  %v74 = vlaneseq
  %v75 = vshrl.u32 %v74, 7
  %v76 = vsub.s32 0, %v75
  %v77 = vrot.slane %v33, %v76
  %v78 = vmul.f32 %v37, %v77
  %v79 = vmul.f32 %v42, %v77
  %v80 = vmul.f32 %v47, %v77
  %v81 = vmul.f32 %v52, %v77
  %v82 = vmul.f32 %v57, %v77
  %v83 = vmul.f32 %v62, %v77
  %v84 = vmul.f32 %v67, %v77
  %v85 = vmul.f32 %v72, %v77
  %86 = vset.pattern.permute.xlu0 1
  %87 = vperm.xlu0 %86, %v25
  %v88 = vpop.permute.xlu0 %87
  %90 = vset.pattern.permute.xlu0 1
  %91 = vperm.xlu0 %90, %v26
  %v92 = vpop.permute.xlu0 %91
  %94 = vset.pattern.permute.xlu0 1
  %95 = vperm.xlu0 %94, %v27
  %v96 = vpop.permute.xlu0 %95
  %98 = vset.pattern.permute.xlu0 1
  %99 = vperm.xlu0 %98, %v28
  %v100 = vpop.permute.xlu0 %99
  %102 = vset.pattern.permute.xlu0 1
  %103 = vperm.xlu0 %102, %v29
  %v104 = vpop.permute.xlu0 %103
  %106 = vset.pattern.permute.xlu0 1
  %107 = vperm.xlu0 %106, %v30
  %v108 = vpop.permute.xlu0 %107
  %110 = vset.pattern.permute.xlu0 1
  %111 = vperm.xlu0 %110, %v31
  %v112 = vpop.permute.xlu0 %111
  %114 = vset.pattern.permute.xlu0 1
  %115 = vperm.xlu0 %114, %v32
  %v116 = vpop.permute.xlu0 %115
  %v118 = vlaneseq
  %v119 = vshrl.u32 %v118, 7
  %v120 = vsub.s32 1, %v119
  %v121 = vrot.slane %v33, %v120
  %v122 = vmul.f32 %v88, %v121
  %v123 = vmul.f32 %v92, %v121
  %v124 = vmul.f32 %v96, %v121
  %v125 = vmul.f32 %v100, %v121
  %v126 = vmul.f32 %v104, %v121
  %v127 = vmul.f32 %v108, %v121
  %v128 = vmul.f32 %v112, %v121
  %v129 = vmul.f32 %v116, %v121
  %v130 = vadd.f32 %v78, %v122
  %v131 = vadd.f32 %v79, %v123
  %v132 = vadd.f32 %v80, %v124
  %v133 = vadd.f32 %v81, %v125
  %v134 = vadd.f32 %v82, %v126
  %v135 = vadd.f32 %v83, %v127
  %v136 = vadd.f32 %v84, %v128
  %v137 = vadd.f32 %v85, %v129
  %v138 = vld [vmem:[%s3] sm:$0x1]
  %v140 = vlaneseq
  %v141 = vshrl.u32 %v140, 7
  %v142 = vsub.s32 0, %v141
  %v143 = vrot.slane %v138, %v142
  %v145 = vadd.f32 %v130, %v143
  %v146 = vadd.f32 %v131, %v143
  %v147 = vadd.f32 %v132, %v143
  %v148 = vadd.f32 %v133, %v143
  %v149 = vadd.f32 %v134, %v143
  %v150 = vadd.f32 %v135, %v143
  %v151 = vadd.f32 %v136, %v143
  %v152 = vadd.f32 %v137, %v143
  %v153 = vld [vmem:[%s2] sm:$0xf]
  %v154 = vld [vmem:[%s2 + $0x4] sm:$0xf]
  %v155 = vld [vmem:[%s2 + $0x8] sm:$0xf]
  %v156 = vld [vmem:[%s2 + $0xc] sm:$0xf]
  %v157 = vxor.u32 %v145, 2147483648
  %v158 = vmul.f32 %v157, 1.442695
  %v159 = vpow.pop %v158
  %v160 = vadd.f32 %v159, 1.0
  %v161 = vrcp.pop %v160
  %v162 = vmul.f32 1.0, %v161
  %v163 = vmul.f32 %v162, 2.0
  %v164 = vsub.f32 %v163, 1.0
  %v165 = vmul.f32 %v162, 0.0
  %167 = vrot.lane.b32.xlu0 %v164, 64
  %v168 = vpop.permute.xlu0 %167
  %v170 = vmul.f32 %v162, %v168
  %172 = vrot.lane.b32.xlu0 %v170, 32
  %v173 = vpop.permute.xlu0 %172
  %v175 = vadd.f32 %v165, %v173
  %v176 = vtanh.pop %v175
  %178 = vrot.lane.b32.xlu0 %v176, 64
  %v179 = vpop.permute.xlu0 %178
  %v181 = vmul.f32 %v162, %v179
  %v182 = vpack.c.bf16 %v181, %v181
  %184 = vrot.lane.b32.xlu0 %v182, 32
  %v185 = vpop.permute.xlu0 %184
  %v190 = vunpack.c.l.b16 %v153
  %v191 = vunpack.c.l.b16 %v154
  %v192 = vunpack.c.l.b16 %v155
  %v193 = vunpack.c.l.b16 %v156
  %v194 = vpack.c.b16 %v191, %v190
  %v195 = vpack.c.b16 %v193, %v192
  %vm198 = vcmask 261120
  %v200 = vsel %vm198, %v185, 0
  %202 = vmatprep.subr.bf16.mxu0 0
  %203 = vmatpush1.bf16.msra.mxu0 %v194
  %204 = vmatprep.subr.bf16.mxu0 0
  %205 = vmatpush1.bf16.msra.mxu0 %v195
  %206 = vmatprep.subr.bf16.mxu0 0
  %207 = vmatpush1.bf16.msra.mxu0 0
  %208 = vmatprep.subr.bf16.mxu0 0
  %209 = vmatpush1.bf16.msra.mxu0 0
  %210 = vmatprep.subr.bf16.mxu0 0
  %211 = vmatpush1.bf16.msra.mxu0 0
  %212 = vmatprep.subr.bf16.mxu0 0
  %213 = vmatpush1.bf16.msra.mxu0 0
  %214 = vmatprep.subr.bf16.mxu0 0
  %215 = vmatpush1.bf16.msra.mxu0 0
  %216 = vmatprep.subr.bf16.mxu0 0
  %217 = vmatpush1.bf16.msra.mxu0 0
  %218 = vmatprep.subr.bf16.mxu0 0
  %219 = vmatpush1.bf16.msra.mxu0 0
  %220 = vmatprep.subr.bf16.mxu0 0
  %221 = vmatpush1.bf16.msra.mxu0 0
  %222 = vmatprep.subr.bf16.mxu0 0
  %223 = vmatpush1.bf16.msra.mxu0 0
  %224 = vmatprep.subr.bf16.mxu0 0
  %225 = vmatpush1.bf16.msra.mxu0 0
  %226 = vmatprep.subr.bf16.mxu0 0
  %227 = vmatpush1.bf16.msra.mxu0 0
  %228 = vmatprep.subr.bf16.mxu0 0
  %229 = vmatpush1.bf16.msra.mxu0 0
  %230 = vmatprep.subr.bf16.mxu0 0
  %231 = vmatpush1.bf16.msra.mxu0 0
  %232 = vmatprep.subr.bf16.mxu0 0
  %233 = vmatpush1.bf16.msra.mxu0 0
  %234 = vmatprep.mubr.bf16.mxu0 0
  %235 = vmatmul.mubr.bf16.gmra.mrb[0].mxu0 %v200
  %v236 = vpop.f32.mrb[0].mxu0
  %v237 = vadd.f32 0.0, %v236
  %v238 = vpop.f32.mrb[0].mxu0
  %v239 = vpop.f32.mrb[0].mxu0
  %v240 = vpop.f32.mrb[0].mxu0
  %241 = vdwg.mxu0
  %v242 = vadd.f32 %v146, %v237
  %v243 = vxor.u32 %v242, 2147483648
  %v244 = vmul.f32 %v243, 1.442695
  %v245 = vpow.pop %v244
  %v246 = vadd.f32 %v245, 1.0
  %v247 = vrcp.pop %v246
  %v248 = vmul.f32 1.0, %v247
  %v249 = vmul.f32 %v248, 2.0
  %v250 = vsub.f32 %v249, 1.0
  %v251 = vmul.f32 %v248, %v175
  %253 = vrot.lane.b32.xlu0 %v250, 64
  %v254 = vpop.permute.xlu0 %253
  %v256 = vmul.f32 %v248, %v254
  %258 = vrot.lane.b32.xlu0 %v256, 32
  %v259 = vpop.permute.xlu0 %258
  %v261 = vadd.f32 %v251, %v259
  %v262 = vtanh.pop %v261
  %264 = vrot.lane.b32.xlu0 %v262, 64
  %v265 = vpop.permute.xlu0 %264
  %v267 = vmul.f32 %v248, %v265
  %v268 = vpack.c.bf16 %v267, %v267
  %270 = vrot.lane.b32.xlu0 %v268, 32
  %v271 = vpop.permute.xlu0 %270
  %v273 = vsel %vm198, %v271, 0
  %275 = vmatprep.subr.bf16.mxu0 0
  %276 = vmatpush1.bf16.msra.mxu0 %v194
  %277 = vmatprep.subr.bf16.mxu0 0
  %278 = vmatpush1.bf16.msra.mxu0 %v195
  %279 = vmatprep.subr.bf16.mxu0 0
  %280 = vmatpush1.bf16.msra.mxu0 0
  %281 = vmatprep.subr.bf16.mxu0 0
  %282 = vmatpush1.bf16.msra.mxu0 0
  %283 = vmatprep.subr.bf16.mxu0 0
  %284 = vmatpush1.bf16.msra.mxu0 0
  %285 = vmatprep.subr.bf16.mxu0 0
  %286 = vmatpush1.bf16.msra.mxu0 0
  %287 = vmatprep.subr.bf16.mxu0 0
  %288 = vmatpush1.bf16.msra.mxu0 0
  %289 = vmatprep.subr.bf16.mxu0 0
  %290 = vmatpush1.bf16.msra.mxu0 0
  %291 = vmatprep.subr.bf16.mxu0 0
  %292 = vmatpush1.bf16.msra.mxu0 0
  %293 = vmatprep.subr.bf16.mxu0 0
  %294 = vmatpush1.bf16.msra.mxu0 0
  %295 = vmatprep.subr.bf16.mxu0 0
  %296 = vmatpush1.bf16.msra.mxu0 0
  %297 = vmatprep.subr.bf16.mxu0 0
  %298 = vmatpush1.bf16.msra.mxu0 0
  %299 = vmatprep.subr.bf16.mxu0 0
  %300 = vmatpush1.bf16.msra.mxu0 0
  %301 = vmatprep.subr.bf16.mxu0 0
  %302 = vmatpush1.bf16.msra.mxu0 0
  %303 = vmatprep.subr.bf16.mxu0 0
  %304 = vmatpush1.bf16.msra.mxu0 0
  %305 = vmatprep.subr.bf16.mxu0 0
  %306 = vmatpush1.bf16.msra.mxu0 0
  %307 = vmatprep.mubr.bf16.mxu0 0
  %308 = vmatmul.mubr.bf16.gmra.mrb[0].mxu0 %v273
  %v309 = vpop.f32.mrb[0].mxu0
  %v310 = vadd.f32 0.0, %v309
  %v311 = vpop.f32.mrb[0].mxu0
  %v312 = vpop.f32.mrb[0].mxu0
  %v313 = vpop.f32.mrb[0].mxu0
  %314 = vdwg.mxu0
  %v315 = vadd.f32 %v147, %v310
  %v316 = vxor.u32 %v315, 2147483648
  %v317 = vmul.f32 %v316, 1.442695
  %v318 = vpow.pop %v317
  %v319 = vadd.f32 %v318, 1.0
  %v320 = vrcp.pop %v319
  %v321 = vmul.f32 1.0, %v320
  %v322 = vmul.f32 %v321, 2.0
  %v323 = vsub.f32 %v322, 1.0
  %v324 = vmul.f32 %v321, %v261
  %326 = vrot.lane.b32.xlu0 %v323, 64
  %v327 = vpop.permute.xlu0 %326
  %v329 = vmul.f32 %v321, %v327
  %331 = vrot.lane.b32.xlu0 %v329, 32
  %v332 = vpop.permute.xlu0 %331
  %v334 = vadd.f32 %v324, %v332
  %v335 = vtanh.pop %v334
  %337 = vrot.lane.b32.xlu0 %v335, 64
  %v338 = vpop.permute.xlu0 %337
  %v340 = vmul.f32 %v321, %v338
  %v341 = vpack.c.bf16 %v340, %v340
  %343 = vrot.lane.b32.xlu0 %v341, 32
  %v344 = vpop.permute.xlu0 %343
  %v346 = vsel %vm198, %v344, 0
  %348 = vmatprep.subr.bf16.mxu0 0
  %349 = vmatpush1.bf16.msra.mxu0 %v194
  %350 = vmatprep.subr.bf16.mxu0 0
  %351 = vmatpush1.bf16.msra.mxu0 %v195
  %352 = vmatprep.subr.bf16.mxu0 0
  %353 = vmatpush1.bf16.msra.mxu0 0
  %354 = vmatprep.subr.bf16.mxu0 0
  %355 = vmatpush1.bf16.msra.mxu0 0
  %356 = vmatprep.subr.bf16.mxu0 0
  %357 = vmatpush1.bf16.msra.mxu0 0
  %358 = vmatprep.subr.bf16.mxu0 0
  %359 = vmatpush1.bf16.msra.mxu0 0
  %360 = vmatprep.subr.bf16.mxu0 0
  %361 = vmatpush1.bf16.msra.mxu0 0
  %362 = vmatprep.subr.bf16.mxu0 0
  %363 = vmatpush1.bf16.msra.mxu0 0
  %364 = vmatprep.subr.bf16.mxu0 0
  %365 = vmatpush1.bf16.msra.mxu0 0
  %366 = vmatprep.subr.bf16.mxu0 0
  %367 = vmatpush1.bf16.msra.mxu0 0
  %368 = vmatprep.subr.bf16.mxu0 0
  %369 = vmatpush1.bf16.msra.mxu0 0
  %370 = vmatprep.subr.bf16.mxu0 0
  %371 = vmatpush1.bf16.msra.mxu0 0
  %372 = vmatprep.subr.bf16.mxu0 0
  %373 = vmatpush1.bf16.msra.mxu0 0
  %374 = vmatprep.subr.bf16.mxu0 0
  %375 = vmatpush1.bf16.msra.mxu0 0
  %376 = vmatprep.subr.bf16.mxu0 0
  %377 = vmatpush1.bf16.msra.mxu0 0
  %378 = vmatprep.subr.bf16.mxu0 0
  %379 = vmatpush1.bf16.msra.mxu0 0
  %380 = vmatprep.mubr.bf16.mxu0 0
  %381 = vmatmul.mubr.bf16.gmra.mrb[0].mxu0 %v346
  %v382 = vpop.f32.mrb[0].mxu0
  %v383 = vadd.f32 0.0, %v382
  %v384 = vpop.f32.mrb[0].mxu0
  %v385 = vpop.f32.mrb[0].mxu0
  %v386 = vpop.f32.mrb[0].mxu0
  %387 = vdwg.mxu0
  %v388 = vadd.f32 %v148, %v383
  %v389 = vxor.u32 %v388, 2147483648
  %v390 = vmul.f32 %v389, 1.442695
  %v391 = vpow.pop %v390
  %v392 = vadd.f32 %v391, 1.0
  %v393 = vrcp.pop %v392
  %v394 = vmul.f32 1.0, %v393
  %v395 = vmul.f32 %v394, 2.0
  %v396 = vsub.f32 %v395, 1.0
  %v397 = vmul.f32 %v394, %v334
  %399 = vrot.lane.b32.xlu0 %v396, 64
  %v400 = vpop.permute.xlu0 %399
  %v402 = vmul.f32 %v394, %v400
  %404 = vrot.lane.b32.xlu0 %v402, 32
  %v405 = vpop.permute.xlu0 %404
  %v407 = vadd.f32 %v397, %v405
  %v408 = vtanh.pop %v407
  %410 = vrot.lane.b32.xlu0 %v408, 64
  %v411 = vpop.permute.xlu0 %410
  %v413 = vmul.f32 %v394, %v411
  %v414 = vpack.c.bf16 %v413, %v413
  %416 = vrot.lane.b32.xlu0 %v414, 32
  %v417 = vpop.permute.xlu0 %416
  %v419 = vsel %vm198, %v417, 0
  %421 = vmatprep.subr.bf16.mxu0 0
  %422 = vmatpush1.bf16.msra.mxu0 %v194
  %423 = vmatprep.subr.bf16.mxu0 0
  %424 = vmatpush1.bf16.msra.mxu0 %v195
  %425 = vmatprep.subr.bf16.mxu0 0
  %426 = vmatpush1.bf16.msra.mxu0 0
  %427 = vmatprep.subr.bf16.mxu0 0
  %428 = vmatpush1.bf16.msra.mxu0 0
  %429 = vmatprep.subr.bf16.mxu0 0
  %430 = vmatpush1.bf16.msra.mxu0 0
  %431 = vmatprep.subr.bf16.mxu0 0
  %432 = vmatpush1.bf16.msra.mxu0 0
  %433 = vmatprep.subr.bf16.mxu0 0
  %434 = vmatpush1.bf16.msra.mxu0 0
  %435 = vmatprep.subr.bf16.mxu0 0
  %436 = vmatpush1.bf16.msra.mxu0 0
  %437 = vmatprep.subr.bf16.mxu0 0
  %438 = vmatpush1.bf16.msra.mxu0 0
  %439 = vmatprep.subr.bf16.mxu0 0
  %440 = vmatpush1.bf16.msra.mxu0 0
  %441 = vmatprep.subr.bf16.mxu0 0
  %442 = vmatpush1.bf16.msra.mxu0 0
  %443 = vmatprep.subr.bf16.mxu0 0
  %444 = vmatpush1.bf16.msra.mxu0 0
  %445 = vmatprep.subr.bf16.mxu0 0
  %446 = vmatpush1.bf16.msra.mxu0 0
  %447 = vmatprep.subr.bf16.mxu0 0
  %448 = vmatpush1.bf16.msra.mxu0 0
  %449 = vmatprep.subr.bf16.mxu0 0
  %450 = vmatpush1.bf16.msra.mxu0 0
  %451 = vmatprep.subr.bf16.mxu0 0
  %452 = vmatpush1.bf16.msra.mxu0 0
  %453 = vmatprep.mubr.bf16.mxu0 0
  %454 = vmatmul.mubr.bf16.gmra.mrb[0].mxu0 %v419
  %v455 = vpop.f32.mrb[0].mxu0
  %v456 = vadd.f32 0.0, %v455
  %v457 = vpop.f32.mrb[0].mxu0
  %v458 = vpop.f32.mrb[0].mxu0
  %v459 = vpop.f32.mrb[0].mxu0
  %460 = vdwg.mxu0
  %v461 = vadd.f32 %v149, %v456
  %v462 = vxor.u32 %v461, 2147483648
  %v463 = vmul.f32 %v462, 1.442695
  %v464 = vpow.pop %v463
  %v465 = vadd.f32 %v464, 1.0
  %v466 = vrcp.pop %v465
  %v467 = vmul.f32 1.0, %v466
  %v468 = vmul.f32 %v467, 2.0
  %v469 = vsub.f32 %v468, 1.0
  %v470 = vmul.f32 %v467, %v407
  %472 = vrot.lane.b32.xlu0 %v469, 64
  %v473 = vpop.permute.xlu0 %472
  %v475 = vmul.f32 %v467, %v473
  %477 = vrot.lane.b32.xlu0 %v475, 32
  %v478 = vpop.permute.xlu0 %477
  %v480 = vadd.f32 %v470, %v478
  %v481 = vtanh.pop %v480
  %483 = vrot.lane.b32.xlu0 %v481, 64
  %v484 = vpop.permute.xlu0 %483
  %v486 = vmul.f32 %v467, %v484
  %v487 = vpack.c.bf16 %v486, %v486
  %489 = vrot.lane.b32.xlu0 %v487, 32
  %v490 = vpop.permute.xlu0 %489
  %v492 = vsel %vm198, %v490, 0
  %494 = vmatprep.subr.bf16.mxu0 0
  %495 = vmatpush1.bf16.msra.mxu0 %v194
  %496 = vmatprep.subr.bf16.mxu0 0
  %497 = vmatpush1.bf16.msra.mxu0 %v195
  %498 = vmatprep.subr.bf16.mxu0 0
  %499 = vmatpush1.bf16.msra.mxu0 0
  %500 = vmatprep.subr.bf16.mxu0 0
  %501 = vmatpush1.bf16.msra.mxu0 0
  %502 = vmatprep.subr.bf16.mxu0 0
  %503 = vmatpush1.bf16.msra.mxu0 0
  %504 = vmatprep.subr.bf16.mxu0 0
  %505 = vmatpush1.bf16.msra.mxu0 0
  %506 = vmatprep.subr.bf16.mxu0 0
  %507 = vmatpush1.bf16.msra.mxu0 0
  %508 = vmatprep.subr.bf16.mxu0 0
  %509 = vmatpush1.bf16.msra.mxu0 0
  %510 = vmatprep.subr.bf16.mxu0 0
  %511 = vmatpush1.bf16.msra.mxu0 0
  %512 = vmatprep.subr.bf16.mxu0 0
  %513 = vmatpush1.bf16.msra.mxu0 0
  %514 = vmatprep.subr.bf16.mxu0 0
  %515 = vmatpush1.bf16.msra.mxu0 0
  %516 = vmatprep.subr.bf16.mxu0 0
  %517 = vmatpush1.bf16.msra.mxu0 0
  %518 = vmatprep.subr.bf16.mxu0 0
  %519 = vmatpush1.bf16.msra.mxu0 0
  %520 = vmatprep.subr.bf16.mxu0 0
  %521 = vmatpush1.bf16.msra.mxu0 0
  %522 = vmatprep.subr.bf16.mxu0 0
  %523 = vmatpush1.bf16.msra.mxu0 0
  %524 = vmatprep.subr.bf16.mxu0 0
  %525 = vmatpush1.bf16.msra.mxu0 0
  %526 = vmatprep.mubr.bf16.mxu0 0
  %527 = vmatmul.mubr.bf16.gmra.mrb[0].mxu0 %v492
  %v528 = vpop.f32.mrb[0].mxu0
  %v529 = vadd.f32 0.0, %v528
  %v530 = vpop.f32.mrb[0].mxu0
  %v531 = vpop.f32.mrb[0].mxu0
  %v532 = vpop.f32.mrb[0].mxu0
  %533 = vdwg.mxu0
  %v534 = vadd.f32 %v150, %v529
  %v535 = vxor.u32 %v534, 2147483648
  %v536 = vmul.f32 %v535, 1.442695
  %v537 = vpow.pop %v536
  %v538 = vadd.f32 %v537, 1.0
  %v539 = vrcp.pop %v538
  %v540 = vmul.f32 1.0, %v539
  %v541 = vmul.f32 %v540, 2.0
  %v542 = vsub.f32 %v541, 1.0
  %v543 = vmul.f32 %v540, %v480
  %545 = vrot.lane.b32.xlu0 %v542, 64
  %v546 = vpop.permute.xlu0 %545
  %v548 = vmul.f32 %v540, %v546
  %550 = vrot.lane.b32.xlu0 %v548, 32
  %v551 = vpop.permute.xlu0 %550
  %v553 = vadd.f32 %v543, %v551
  %v554 = vtanh.pop %v553
  %556 = vrot.lane.b32.xlu0 %v554, 64
  %v557 = vpop.permute.xlu0 %556
  %v559 = vmul.f32 %v540, %v557
  %v560 = vpack.c.bf16 %v559, %v559
  %562 = vrot.lane.b32.xlu0 %v560, 32
  %v563 = vpop.permute.xlu0 %562
  %v565 = vsel %vm198, %v563, 0
  %567 = vmatprep.subr.bf16.mxu0 0
  %568 = vmatpush1.bf16.msra.mxu0 %v194
  %569 = vmatprep.subr.bf16.mxu0 0
  %570 = vmatpush1.bf16.msra.mxu0 %v195
  %571 = vmatprep.subr.bf16.mxu0 0
  %572 = vmatpush1.bf16.msra.mxu0 0
  %573 = vmatprep.subr.bf16.mxu0 0
  %574 = vmatpush1.bf16.msra.mxu0 0
  %575 = vmatprep.subr.bf16.mxu0 0
  %576 = vmatpush1.bf16.msra.mxu0 0
  %577 = vmatprep.subr.bf16.mxu0 0
  %578 = vmatpush1.bf16.msra.mxu0 0
  %579 = vmatprep.subr.bf16.mxu0 0
  %580 = vmatpush1.bf16.msra.mxu0 0
  %581 = vmatprep.subr.bf16.mxu0 0
  %582 = vmatpush1.bf16.msra.mxu0 0
  %583 = vmatprep.subr.bf16.mxu0 0
  %584 = vmatpush1.bf16.msra.mxu0 0
  %585 = vmatprep.subr.bf16.mxu0 0
  %586 = vmatpush1.bf16.msra.mxu0 0
  %587 = vmatprep.subr.bf16.mxu0 0
  %588 = vmatpush1.bf16.msra.mxu0 0
  %589 = vmatprep.subr.bf16.mxu0 0
  %590 = vmatpush1.bf16.msra.mxu0 0
  %591 = vmatprep.subr.bf16.mxu0 0
  %592 = vmatpush1.bf16.msra.mxu0 0
  %593 = vmatprep.subr.bf16.mxu0 0
  %594 = vmatpush1.bf16.msra.mxu0 0
  %595 = vmatprep.subr.bf16.mxu0 0
  %596 = vmatpush1.bf16.msra.mxu0 0
  %597 = vmatprep.subr.bf16.mxu0 0
  %598 = vmatpush1.bf16.msra.mxu0 0
  %599 = vmatprep.mubr.bf16.mxu0 0
  %600 = vmatmul.mubr.bf16.gmra.mrb[0].mxu0 %v565
  %v601 = vpop.f32.mrb[0].mxu0
  %v602 = vadd.f32 0.0, %v601
  %v603 = vpop.f32.mrb[0].mxu0
  %v604 = vpop.f32.mrb[0].mxu0
  %v605 = vpop.f32.mrb[0].mxu0
  %606 = vdwg.mxu0
  %v607 = vadd.f32 %v151, %v602
  %v608 = vxor.u32 %v607, 2147483648
  %v609 = vmul.f32 %v608, 1.442695
  %v610 = vpow.pop %v609
  %v611 = vadd.f32 %v610, 1.0
  %v612 = vrcp.pop %v611
  %v613 = vmul.f32 1.0, %v612
  %v614 = vmul.f32 %v613, 2.0
  %v615 = vsub.f32 %v614, 1.0
  %v616 = vmul.f32 %v613, %v553
  %618 = vrot.lane.b32.xlu0 %v615, 64
  %v619 = vpop.permute.xlu0 %618
  %v621 = vmul.f32 %v613, %v619
  %623 = vrot.lane.b32.xlu0 %v621, 32
  %v624 = vpop.permute.xlu0 %623
  %v626 = vadd.f32 %v616, %v624
  %v627 = vtanh.pop %v626
  %629 = vrot.lane.b32.xlu0 %v627, 64
  %v630 = vpop.permute.xlu0 %629
  %v632 = vmul.f32 %v613, %v630
  %v633 = vpack.c.bf16 %v632, %v632
  %635 = vrot.lane.b32.xlu0 %v633, 32
  %v636 = vpop.permute.xlu0 %635
  %v638 = vsel %vm198, %v636, 0
  %640 = vmatprep.subr.bf16.mxu0 0
  %641 = vmatpush1.bf16.msra.mxu0 %v194
  %642 = vmatprep.subr.bf16.mxu0 0
  %643 = vmatpush1.bf16.msra.mxu0 %v195
  %644 = vmatprep.subr.bf16.mxu0 0
  %645 = vmatpush1.bf16.msra.mxu0 0
  %646 = vmatprep.subr.bf16.mxu0 0
  %647 = vmatpush1.bf16.msra.mxu0 0
  %648 = vmatprep.subr.bf16.mxu0 0
  %649 = vmatpush1.bf16.msra.mxu0 0
  %650 = vmatprep.subr.bf16.mxu0 0
  %651 = vmatpush1.bf16.msra.mxu0 0
  %652 = vmatprep.subr.bf16.mxu0 0
  %653 = vmatpush1.bf16.msra.mxu0 0
  %654 = vmatprep.subr.bf16.mxu0 0
  %655 = vmatpush1.bf16.msra.mxu0 0
  %656 = vmatprep.subr.bf16.mxu0 0
  %657 = vmatpush1.bf16.msra.mxu0 0
  %658 = vmatprep.subr.bf16.mxu0 0
  %659 = vmatpush1.bf16.msra.mxu0 0
  %660 = vmatprep.subr.bf16.mxu0 0
  %661 = vmatpush1.bf16.msra.mxu0 0
  %662 = vmatprep.subr.bf16.mxu0 0
  %663 = vmatpush1.bf16.msra.mxu0 0
  %664 = vmatprep.subr.bf16.mxu0 0
  %665 = vmatpush1.bf16.msra.mxu0 0
  %666 = vmatprep.subr.bf16.mxu0 0
  %667 = vmatpush1.bf16.msra.mxu0 0
  %668 = vmatprep.subr.bf16.mxu0 0
  %669 = vmatpush1.bf16.msra.mxu0 0
  %670 = vmatprep.subr.bf16.mxu0 0
  %671 = vmatpush1.bf16.msra.mxu0 0
  %672 = vmatprep.mubr.bf16.mxu0 0
  %673 = vmatmul.mubr.bf16.gmra.mrb[0].mxu0 %v638
  %v674 = vpop.f32.mrb[0].mxu0
  %v675 = vadd.f32 0.0, %v674
  %v676 = vpop.f32.mrb[0].mxu0
  %v677 = vpop.f32.mrb[0].mxu0
  %v678 = vpop.f32.mrb[0].mxu0
  %679 = vdwg.mxu0
  %v680 = vadd.f32 %v152, %v675
  %v681 = vxor.u32 %v680, 2147483648
  %v682 = vmul.f32 %v681, 1.442695
  %v683 = vpow.pop %v682
  %v684 = vadd.f32 %v683, 1.0
  %v685 = vrcp.pop %v684
  %v686 = vmul.f32 1.0, %v685
  %v687 = vmul.f32 %v686, 2.0
  %v688 = vsub.f32 %v687, 1.0
  %v689 = vmul.f32 %v686, %v626
  %691 = vrot.lane.b32.xlu0 %v688, 64
  %v692 = vpop.permute.xlu0 %691
  %v694 = vmul.f32 %v686, %v692
  %696 = vrot.lane.b32.xlu0 %v694, 32
  %v697 = vpop.permute.xlu0 %696
  %v699 = vadd.f32 %v689, %v697
  %v700 = vtanh.pop %v699
  %702 = vrot.lane.b32.xlu0 %v700, 64
  %v703 = vpop.permute.xlu0 %702
  %v705 = vmul.f32 %v686, %v703
  %v706 = vld [vmem:[%s4] sm:$0x1]
  %v708 = vlaneseq
  %v709 = vshrl.u32 %v708, 7
  %v710 = vsub.s32 0, %v709
  %v711 = vrot.slane %v706, %v710
  %712 = vrot.lane.b32.xlu0 %v711, 96
  %v713 = vpop.permute.xlu0 %712
  %v715 = vmul.f32 %v705, %v713
  %717 = vrot.lane.b32.xlu0 %v715, 32
  %v718 = vpop.permute.xlu0 %717
  %v720 = vsel %vm198, %v718, 0.0
  %721 = vadd.xlane.f32.xlu0 %v720
  %v722 = vpop.xlane.xlu0 %721
  %s723 = sld [smem:[#allocation2]]
  %v724 = vstv %s723
  %v725 = vadd.f32 %v722, %v724
  %vm726 = vcmask 7168
  %727 = vst.msk [vmem:[%s6] sm:$0xff] %vm726, %v725
  // Predicated region
  $region26: #{adding_model_forward.1} parent=0 // pred_check
    _
  $region27: #{adding_model_forward.1} parent=0 // pred_check_branch
    %729 = sbr.rel (0) target = $region29
  $region28: #{adding_model_forward.1} parent=0 // pred_region
    _
  $region29: #{adding_model_forward.1} parent=0 // pred_fallthru
    _
  // Predicated region
  $region30: #{adding_model_forward.1} parent=0 // pred_check
    _
  $region31: #{adding_model_forward.1} parent=0 // pred_check_branch
    %731 = sbr.rel (0) target = $region33
  $region32: #{adding_model_forward.1} parent=0 // pred_region
    _
  $region33: #{adding_model_forward.1} parent=0 // pred_fallthru
    _

</llo_original>
